<compile_context>
chip_gen: v6e
topology: v6e:2x2x1
jax: 0.10.0
libtpu: 0.0.40
codegen_flags: <defaults>
</compile_context>

<pallas_src>
import functools

import jax
import jax.numpy as jnp
import numpy as np
from jax import lax
from jax.experimental import pallas as pl
from jax.experimental.pallas import tpu as pltpu


def _round_up(a, b):
    return (a + b - 1) // b * b


# Above default scoped VMEM limits (16 MiB v5e / 32 MiB v6e,v7x), below v7x's
# 64 MiB physical VMEM.
_VMEM_LIMIT_BYTES = 48 * 1024 * 1024


# ---------------------------------------------------------------------------
# Pass 1: tap-folded conv tile + per-channel CENTERED partial statistics.
#   x_ref:     (CK_pad, TILE)      bf16  im2col'd (stride-absorbed) input tile
#   w_ref:     (C_out, CK_pad)     bf16  tap-folded weights (resident)
#   y_ref:     (C_out, TILE)       bf16  conv output tile (lane-dense)
#   stats_ref: (1, C_out, 2)       f32   [:, :, 0] = sum_j y,  [:, :, 1] =
#                                        sum_j (y - sum/TILE)^2  (over all
#                                        TILE columns; padded cols are zero)
def _conv_stats_kernel(x_ref, w_ref, y_ref, stats_ref, *, inv_cols):
    acc = jnp.dot(w_ref[...], x_ref[...], preferred_element_type=jnp.float32)
    y_ref[...] = acc.astype(y_ref.dtype)
    s = jnp.sum(acc, axis=1, keepdims=True)          # (C_out, 1)
    c = s * inv_cols                                  # per-tile per-chan center
    d = acc - c
    q = jnp.sum(d * d, axis=1, keepdims=True)         # centered 2nd moment
    # Pack (s, q) along a width-2 lane axis without a concatenate lowering.
    col = lax.broadcasted_iota(jnp.int32, (s.shape[0], 2), 1)
    stats_ref[0] = jnp.where(col == 0, s, q)


# ---------------------------------------------------------------------------
# Pass 2: folded BN + affine + activation; writes (1, C_out, TILE_L) blocks of
# the final (N, C_out, L_out) output directly (no XLA transpose afterwards).
def _bn_act_kernel(y_ref, scale_ref, shift_ref, o_ref, *, activation):
    y = y_ref[...].astype(jnp.float32) * scale_ref[...] + shift_ref[...]
    if activation == "relu":
        y = jnp.maximum(y, 0.0)
    elif activation == "tanh":
        y = jnp.tanh(y)
    o_ref[0] = y.astype(o_ref.dtype)


@functools.partial(
    jax.jit,
    static_argnames=("stride", "padding", "eps", "activation", "tile_nl",
                     "matmul_dtype", "inter_dtype", "ck_align"))
def batch_norm_conv1d(x, weight, gamma, beta, *, stride, padding, eps=1e-3,
                      activation=None, tile_nl=1024,
                      matmul_dtype=jnp.bfloat16, inter_dtype=jnp.bfloat16,
                      ck_align=16):
    """x: (N, C_in, L), weight: (C_out, C_in, K). Returns (N, C_out, L_out) f32."""
    n, c_in, l = x.shape
    c_out, _, k_size = weight.shape
    pad_l, pad_r = (padding, padding) if isinstance(padding, int) else tuple(padding)
    l_pad = l + pad_l + pad_r
    l_out = (l_pad - k_size) // stride + 1

    # Per-batch column tiling (lane-dense, multiple of 128).
    tile_l = _round_up(min(tile_nl, _round_up(l_out, 128)), 128)
    l_out_pad = _round_up(l_out, tile_l)
    num_lt = l_out_pad // tile_l
    num_tiles = n * num_lt
    nl_pad = n * l_out_pad

    # Contraction dim (K*C_in); 16 = bf16 sublane packing minimum.  Set
    # ck_align=128 (v5e) / 256 (v6e, v7x) for full MXU fill at production
    # channel counts.
    ck = k_size * c_in
    ck_pad = _round_up(ck, ck_align)

    # ---- Wrapper-side layout plumbing, all in bf16 (HBM, plain XLA ops) ----
    x_pad = jnp.pad(x.astype(matmul_dtype), ((0, 0), (0, 0), (pad_l, pad_r)))
    taps = []
    for k in range(k_size):
        taps.append(lax.slice(x_pad, (0, 0, k),
                              (n, c_in, k + stride * (l_out - 1) + 1),
                              (1, 1, stride)))              # (N, C_in, L_out)
    xim = jnp.stack(taps, axis=1)                            # (N, K, C_in, L_out)
    xim = jnp.transpose(xim, (1, 2, 0, 3)).reshape(ck, n, l_out)
    xim = jnp.pad(xim, ((0, ck_pad - ck), (0, 0), (0, l_out_pad - l_out)))
    xim = xim.reshape(ck_pad, nl_pad)                        # cols: b*l_out_pad + t

    w_fold = jnp.transpose(weight, (0, 2, 1)).reshape(c_out, ck)
    w_fold = jnp.pad(w_fold.astype(matmul_dtype), ((0, 0), (0, ck_pad - ck)))

    mm_b = np.dtype(matmul_dtype).itemsize
    int_b = np.dtype(inter_dtype).itemsize

    # ---- Pass 1: conv tiles + per-tile centered channel stats --------------
    cost1 = pl.CostEstimate(
        flops=int(2 * c_out * ck_pad * nl_pad + 3 * c_out * nl_pad),
        transcendentals=0,
        bytes_accessed=int(ck_pad * nl_pad * mm_b + c_out * ck_pad * mm_b
                           + c_out * nl_pad * int_b + num_tiles * c_out * 8))
    conv2d, stats = pl.pallas_call(
        functools.partial(_conv_stats_kernel, inv_cols=1.0 / float(tile_l)),
        grid=(num_tiles,),
        in_specs=[
            pl.BlockSpec((ck_pad, tile_l), lambda i: (0, i)),
            pl.BlockSpec((c_out, ck_pad), lambda i: (0, 0)),   # resident weights
        ],
        out_specs=[
            pl.BlockSpec((c_out, tile_l), lambda i: (0, i)),
            pl.BlockSpec((1, c_out, 2), lambda i: (i, 0, 0)),
        ],
        out_shape=[
            jax.ShapeDtypeStruct((c_out, nl_pad), inter_dtype),
            jax.ShapeDtypeStruct((num_tiles, c_out, 2), jnp.float32),
        ],
        compiler_params=pltpu.CompilerParams(
            dimension_semantics=("parallel",),
            vmem_limit_bytes=_VMEM_LIMIT_BYTES),
        cost_estimate=cost1,
    )(xim, w_fold)

    # ---- Merge per-tile stats (parallel/Welford-style; no E[y^2]-E[y]^2) ---
    # Static per-tile valid column counts (tail of each batch segment is zero
    # padded; padded zeros contribute pad_t * c_t^2 to q_t, removed below).
    valid_np = np.minimum(tile_l,
                          l_out - (np.arange(num_tiles) % num_lt) * tile_l
                          ).astype(np.float32)
    valid = jnp.asarray(valid_np)[:, None]                    # (num_tiles, 1)
    pad_cols = jnp.asarray(tile_l - valid_np)[:, None]

    s_t = stats[:, :, 0]                                      # (num_tiles, C_out)
    q_t = stats[:, :, 1]
    count = jnp.float32(n * l_out)
    c_t = s_t * (1.0 / tile_l)                                # kernel's center
    mean = jnp.sum(s_t, axis=0) / count                       # (C_out,)
    d = c_t - mean[None, :]
    m2 = jnp.sum(q_t - pad_cols * c_t * c_t
                 + 2.0 * d * (s_t - valid * c_t)
                 + valid * d * d, axis=0)
    var = jnp.maximum(m2 / count, 0.0)
    scale = gamma.astype(jnp.float32) * lax.rsqrt(var + eps)
    shift = beta.astype(jnp.float32) - mean * scale

    # ---- Pass 2: normalize + affine + activation, NCL output layout --------
    cost2 = pl.CostEstimate(
        flops=int(3 * c_out * nl_pad),
        transcendentals=int(c_out * nl_pad) if activation == "tanh" else 0,
        bytes_accessed=int(c_out * nl_pad * int_b + n * c_out * l_out * 4
                           + 2 * c_out * 4))
    out = pl.pallas_call(
        functools.partial(_bn_act_kernel, activation=activation),
        grid=(n, num_lt),
        in_specs=[
            pl.BlockSpec((c_out, tile_l), lambda b, j: (0, b * num_lt + j)),
            pl.BlockSpec((c_out, 1), lambda b, j: (0, 0)),
            pl.BlockSpec((c_out, 1), lambda b, j: (0, 0)),
        ],
        out_specs=pl.BlockSpec((1, c_out, tile_l), lambda b, j: (b, 0, j)),
        out_shape=jax.ShapeDtypeStruct((n, c_out, l_out), jnp.float32),
        compiler_params=pltpu.CompilerParams(
            dimension_semantics=("parallel", "parallel"),
            vmem_limit_bytes=_VMEM_LIMIT_BYTES),
        cost_estimate=cost2,
    )(conv2d, scale.reshape(c_out, 1), shift.reshape(c_out, 1))
    # NOTE: input_output_aliases not applicable here -- the bf16 (C_out, NL)
    # intermediate and the f32 (N, C_out, L_out) output differ in shape/dtype.
    return out


# ---------------------------------------------------------------------------
# Pure-JAX reference at matched precision: bf16 matmul operands, f32
# accumulation and BN statistics, conv intermediate rounded to `inter_dtype`
# (exactly what the kernel stores between its two passes).
def _reference(x, weight, gamma, beta, *, stride, padding, eps, activation,
               matmul_dtype, inter_dtype):
    pad_l, pad_r = (padding, padding) if isinstance(padding, int) else tuple(padding)
    x_pad = jnp.pad(x, ((0, 0), (0, 0), (pad_l, pad_r))).astype(matmul_dtype)
    y = lax.conv_general_dilated(x_pad, weight.astype(matmul_dtype),
                                 window_strides=(stride,), padding="VALID",
                                 dimension_numbers=("NCH", "OIH", "NCH"),
                                 preferred_element_type=jnp.float32)
    mean = jnp.mean(y, axis=(0, 2), keepdims=True)
    var = jnp.mean((y - mean) ** 2, axis=(0, 2), keepdims=True)
    yq = y.astype(inter_dtype).astype(jnp.float32)
    yn = (yq - mean) * lax.rsqrt(var + eps)
    yn = gamma.reshape(1, -1, 1) * yn + beta.reshape(1, -1, 1)
    if activation == "relu":
        yn = jnp.maximum(yn, 0.0)
    elif activation == "tanh":
        yn = jnp.tanh(yn)
    return yn


if __name__ == "__main__":
    EPS = 1e-3
    key = jax.random.PRNGKey(0)

    configs = [
        # (N, C_in, C_out, L, K, stride, padding, activation)
        (2, 4, 8, 16, 3, 1, 1, "relu"),
        (2, 4, 8, 16, 5, 2, 2, "tanh"),
    ]
    for (n, c_in, c_out, l, k_size, stride, padding, activation) in configs:
        key, kx, kw = jax.random.split(key, 3)
        x = jax.random.normal(kx, (n, c_in, l), jnp.float32)

        # Deterministic params: xavier_uniform with the activation's gain
        # (as in init_layers()); BatchNorm affine defaults gamma=1, beta=0.
        gain = {"relu": float(np.sqrt(2.0)), "tanh": 5.0 / 3.0, None: 1.0}[activation]
        fan_in, fan_out = c_in * k_size, c_out * k_size
        bound = gain * float(np.sqrt(6.0 / (fan_in + fan_out)))
        weight = jax.random.uniform(kw, (c_out, c_in, k_size), jnp.float32,
                                    -bound, bound)
        gamma = jnp.ones((c_out,), jnp.float32)
        beta = jnp.zeros((c_out,), jnp.float32)

        out = batch_norm_conv1d(x, weight, gamma, beta, stride=stride,
                                padding=padding, eps=EPS, activation=activation)
        out = jax.block_until_ready(out)

        ref = _reference(x, weight, gamma, beta, stride=stride, padding=padding,
                         eps=EPS, activation=activation,
                         matmul_dtype=jnp.bfloat16, inter_dtype=jnp.bfloat16)
        np.testing.assert_allclose(np.asarray(out), np.asarray(ref),
                                   rtol=2e-3, atol=2e-3)

    print("KERNEL_OK")
</pallas_src>

<mosaic_0001>
module attributes {stable_mosaic.version = 11 : i64} {
  func.func @_conv_stats_kernel(%arg0: i32, %arg1: memref<16x128xbf16, #tpu.memory_space<vmem>>, %arg2: memref<8x16xbf16, #tpu.memory_space<vmem>>, %arg3: memref<8x128xbf16, #tpu.memory_space<vmem>>, %arg4: memref<1x8x2xf32, #tpu.memory_space<vmem>>) attributes {dimension_semantics = [#tpu.dimension_semantics<parallel>], iteration_bounds = array<i64: 2>, scalar_prefetch = 0 : i64, scratch_operands = 0 : i64, tpu.core_type = #tpu.core_type<tc>, window_params = [{transform_indices = @transform_0, window_bounds = array<i64: 16, 128>}, {pipeline_mode = #tpu.pipeline_mode<synchronous>, transform_indices = @transform_1, window_bounds = array<i64: 8, 16>}, {transform_indices = @transform_2, window_bounds = array<i64: 8, 128>}, {transform_indices = @transform_3, window_bounds = array<i64: 1, 8, 2>}]} {
    %c0 = arith.constant 0 : index
    %c0_0 = arith.constant 0 : index
    %0 = vector.load %arg2[%c0, %c0_0] : memref<8x16xbf16, #tpu.memory_space<vmem>>, vector<8x16xbf16>
    %c0_1 = arith.constant 0 : index
    %c0_2 = arith.constant 0 : index
    %1 = vector.load %arg1[%c0_1, %c0_2] : memref<16x128xbf16, #tpu.memory_space<vmem>>, vector<16x128xbf16>
    %cst = arith.constant dense<0.000000e+00> : vector<8x128xf32>
    %2 = tpu.matmul %0, %1, %cst {dimension_numbers = #tpu.dot_dimension_numbers<[1], [0], [0], [1], [0, 0, 1, 1], [], []>} : vector<8x16xbf16>, vector<16x128xbf16>, vector<8x128xf32> -> vector<8x128xf32>
    %3 = arith.truncf %2 : vector<8x128xf32> to vector<8x128xbf16>
    %c0_3 = arith.constant 0 : index
    %c0_4 = arith.constant 0 : index
    %4 = vector.load %arg3[%c0_3, %c0_4] : memref<8x128xbf16, #tpu.memory_space<vmem>>, vector<8x128xbf16>
    tpu.vector_store %arg3[%c0_3, %c0_4], %3 {strides = array<i32>} : memref<8x128xbf16, #tpu.memory_space<vmem>>, vector<8x128xbf16>,
    %cst_5 = arith.constant dense<0.000000e+00> : vector<8xf32>
    %5 = vector.multi_reduction <add>, %2, %cst_5 [1] : vector<8x128xf32> to vector<8xf32>
    %6 = vector.shape_cast %5 : vector<8xf32> to vector<8x1xf32>
    %cst_6 = arith.constant 7.812500e-03 : f32
    %7 = vector.broadcast %cst_6 : f32 to vector<8x1xf32>
    %8 = arith.mulf %6, %7 : vector<8x1xf32>
    %9 = vector.broadcast %8 : vector<8x1xf32> to vector<8x128xf32>
    %10 = arith.subf %2, %9 : vector<8x128xf32>
    %11 = arith.mulf %10, %10 : vector<8x128xf32>
    %cst_7 = arith.constant dense<0.000000e+00> : vector<8xf32>
    %12 = vector.multi_reduction <add>, %11, %cst_7 [1] : vector<8x128xf32> to vector<8xf32>
    %13 = vector.shape_cast %12 : vector<8xf32> to vector<8x1xf32>
    %14 = tpu.iota {dimensions = array<i32: 1>} : vector<8x2xi32>
    %c0_i32 = arith.constant 0 : i32
    %15 = vector.broadcast %c0_i32 : i32 to vector<8x2xi32>
    %16 = arith.cmpi eq, %14, %15 : vector<8x2xi32>
    %17 = vector.shape_cast %6 : vector<8x1xf32> to vector<8x1xf32>
    %18 = vector.broadcast %17 : vector<8x1xf32> to vector<8x2xf32>
    %19 = vector.shape_cast %13 : vector<8x1xf32> to vector<8x1xf32>
    %20 = vector.broadcast %19 : vector<8x1xf32> to vector<8x2xf32>
    %21 = arith.select %16, %18, %20 : vector<8x2xi1>, vector<8x2xf32>
    %c0_8 = arith.constant 0 : index
    %c0_9 = arith.constant 0 : index
    %c0_10 = arith.constant 0 : index
    %22 = vector.load %arg4[%c0_8, %c0_9, %c0_10] : memref<1x8x2xf32, #tpu.memory_space<vmem>>, vector<1x8x2xf32>
    %23 = vector.shape_cast %22 : vector<1x8x2xf32> to vector<8x2xf32>
    %24 = vector.shape_cast %21 : vector<8x2xf32> to vector<1x8x2xf32>
    tpu.vector_store %arg4[%c0_8, %c0_9, %c0_10], %24 {strides = array<i32>} : memref<1x8x2xf32, #tpu.memory_space<vmem>>, vector<1x8x2xf32>,
    return
  }
  func.func @transform_0(%arg0: i32) -> (i32, i32) {
    %c0_i32 = arith.constant 0 : i32
    %c0_i32_0 = arith.constant 0 : i32
    return %c0_i32, %arg0 : i32, i32
  }
  func.func @transform_1(%arg0: i32) -> (i32, i32) {
    %c0_i32 = arith.constant 0 : i32
    %c0_i32_0 = arith.constant 0 : i32
    %c0_i32_1 = arith.constant 0 : i32
    return %c0_i32, %c0_i32_0 : i32, i32
  }
  func.func @transform_2(%arg0: i32) -> (i32, i32) {
    %c0_i32 = arith.constant 0 : i32
    %c0_i32_0 = arith.constant 0 : i32
    return %c0_i32, %arg0 : i32, i32
  }
  func.func @transform_3(%arg0: i32) -> (i32, i32, i32) {
    %c0_i32 = arith.constant 0 : i32
    %c0_i32_0 = arith.constant 0 : i32
    %c0_i32_1 = arith.constant 0 : i32
    return %arg0, %c0_i32, %c0_i32_0 : i32, i32, i32
  }
}

module attributes {stable_mosaic.version = 11 : i64} {
  func.func @_bn_act_kernel(%arg0: i32, %arg1: i32, %arg2: memref<8x128xbf16, #tpu.memory_space<vmem>>, %arg3: memref<8x1xf32, #tpu.memory_space<vmem>>, %arg4: memref<8x1xf32, #tpu.memory_space<vmem>>, %arg5: memref<1x8x128xf32, #tpu.memory_space<vmem>>) attributes {dimension_semantics = [#tpu.dimension_semantics<parallel>, #tpu.dimension_semantics<parallel>], iteration_bounds = array<i64: 2, 1>, scalar_prefetch = 0 : i64, scratch_operands = 0 : i64, tpu.core_type = #tpu.core_type<tc>, window_params = [{transform_indices = @transform_0, window_bounds = array<i64: 8, 128>}, {pipeline_mode = #tpu.pipeline_mode<synchronous>, transform_indices = @transform_1, window_bounds = array<i64: 8, 1>}, {pipeline_mode = #tpu.pipeline_mode<synchronous>, transform_indices = @transform_2, window_bounds = array<i64: 8, 1>}, {transform_indices = @transform_3, window_bounds = array<i64: 1, 8, 128>}]} {
    %c0 = arith.constant 0 : index
    %c0_0 = arith.constant 0 : index
    %0 = vector.load %arg2[%c0, %c0_0] : memref<8x128xbf16, #tpu.memory_space<vmem>>, vector<8x128xbf16>
    %1 = arith.extf %0 : vector<8x128xbf16> to vector<8x128xf32>
    %c0_1 = arith.constant 0 : index
    %c0_2 = arith.constant 0 : index
    %2 = vector.load %arg3[%c0_1, %c0_2] : memref<8x1xf32, #tpu.memory_space<vmem>>, vector<8x1xf32>
    %3 = vector.broadcast %2 : vector<8x1xf32> to vector<8x128xf32>
    %4 = arith.mulf %1, %3 : vector<8x128xf32>
    %c0_3 = arith.constant 0 : index
    %c0_4 = arith.constant 0 : index
    %5 = vector.load %arg4[%c0_3, %c0_4] : memref<8x1xf32, #tpu.memory_space<vmem>>, vector<8x1xf32>
    %6 = vector.broadcast %5 : vector<8x1xf32> to vector<8x128xf32>
    %7 = arith.addf %4, %6 : vector<8x128xf32>
    %cst = arith.constant 0.000000e+00 : f32
    %8 = vector.broadcast %cst : f32 to vector<8x128xf32>
    %9 = arith.maximumf %7, %8 : vector<8x128xf32>
    %c0_5 = arith.constant 0 : index
    %c0_6 = arith.constant 0 : index
    %c0_7 = arith.constant 0 : index
    %10 = vector.load %arg5[%c0_5, %c0_6, %c0_7] : memref<1x8x128xf32, #tpu.memory_space<vmem>>, vector<1x8x128xf32>
    %11 = vector.shape_cast %10 : vector<1x8x128xf32> to vector<8x128xf32>
    %12 = vector.shape_cast %9 : vector<8x128xf32> to vector<1x8x128xf32>
    tpu.vector_store %arg5[%c0_5, %c0_6, %c0_7], %12 {strides = array<i32>} : memref<1x8x128xf32, #tpu.memory_space<vmem>>, vector<1x8x128xf32>,
    return
  }
  func.func @transform_0(%arg0: i32, %arg1: i32) -> (i32, i32) {
    %c1_i32 = arith.constant 1 : i32
    %0 = arith.muli %arg0, %c1_i32 : i32
    %1 = arith.addi %0, %arg1 : i32
    %c0_i32 = arith.constant 0 : i32
    %c0_i32_0 = arith.constant 0 : i32
    return %c0_i32, %1 : i32, i32
  }
  func.func @transform_1(%arg0: i32, %arg1: i32) -> (i32, i32) {
    %c0_i32 = arith.constant 0 : i32
    %c0_i32_0 = arith.constant 0 : i32
    %c0_i32_1 = arith.constant 0 : i32
    return %c0_i32, %c0_i32_0 : i32, i32
  }
  func.func @transform_2(%arg0: i32, %arg1: i32) -> (i32, i32) {
    %c0_i32 = arith.constant 0 : i32
    %c0_i32_0 = arith.constant 0 : i32
    %c0_i32_1 = arith.constant 0 : i32
    return %c0_i32, %c0_i32_0 : i32, i32
  }
  func.func @transform_3(%arg0: i32, %arg1: i32) -> (i32, i32, i32) {
    %c0_i32 = arith.constant 0 : i32
    %c0_i32_0 = arith.constant 0 : i32
    return %arg0, %c0_i32, %arg1 : i32, i32, i32
  }
}

</mosaic_0001>

<llo_original>
// kernel: batch_norm_conv1d.3
$region0: #{batch_norm_conv1d.3}
  #allocation0 [shape = 'u32[]', space=smem, size = 0x4, offset = 0x4, fixed_abs, tag = 'smem constant byte address 0x4 - core index']
  #allocation1 [shape = 'u32[144,128]{1,0:T(1,128)}', space=vmem, size = 0x12000, scoped, tag = 'internal scratch']
  %s0 = inlined_call_operand.vmem [shape: bf16[8,256], index: 0, kind: input, shape index: {}]
  %s1 = inlined_call_operand.vmem [shape: f32[8,1], index: 1, kind: input, shape index: {}]
  %s2 = inlined_call_operand.vmem [shape: f32[8,1], index: 2, kind: input, shape index: {}]
  %s3 = inlined_call_operand.hbm [shape: f32[2,8,16], index: 3, kind: output, shape index: {}]
  %s4 = sld [smem:[#allocation0]]
  $region45: #{batch_norm_conv1d.3} parent=0
    _
  %s6 = ssub.s32 1, %s4
  %s7 = scalar_select 0, %s6, %s4
  $region1: #{batch_norm_conv1d.3} parent=0
    #allocation2 [shape = 'u8[8192]{0}', space=vmem, size = 0x2000, scoped, tag = 'output window, operand 0']
    #allocation3 [shape = 's32[2]{0}', space=sflag, size = 0x8, scoped, tag = 'scoped memory for batch_norm_conv1d.3']
    %8 = vsyncpa [#allocation3], 0
    %s9 = scalar_lea.sflag [#allocation3], 1
    %10 = vsyncpa %s9, 0
    loop: start=0, step=1, limit=4
    $region2: #{batch_norm_conv1d.3} parent=1 // loop_pre_header
      _
    $region3: #{batch_norm_conv1d.3} parent=1 // loop_header
      %s12 = sphi 0, %s16
      %p13 = scmp.ge.s32.totalorder %s12, 4
      %s19 = sphi 0, %s31
      %s20 = sphi 0, %s27
      %s21 = sphi 0, %s19
      %s22 = sphi 0, %s20
      %s23 = sphi 0, %s21
      %s24 = sphi 0, %s22
      %s36 = sphi 0, %s38
      %s39 = sphi 0, %s36
      %s40 = sphi 0, %s39
      %s56 = sphi 0, %s40
      %s60 = sphi 0, %s60
      %s62 = sphi 0, %s60
      %s63 = sphi 0, %s62
      %s77 = sphi 0, %s63
      %s81 = sphi 0, %s81
      %s83 = sphi 0, %s81
      %s84 = sphi 0, %s83
      %s98 = sphi 0, %s84
      %s106 = sphi 0, %s108
      %s109 = sphi 0, %s106
      %s110 = sphi 0, %s109
      %s126 = sphi 0, %s110
    $region4: #{batch_norm_conv1d.3} parent=1 // loop_header_branch
      %15 = sbr.rel (%p13) target = $region8
    $region5: #{batch_norm_conv1d.3} parent=1 // loop_body
      %s17 = ssub.s32 %s12, 1
      %s18 = ssub.s32 %s12, 2
      %s25 = sadd.s32 1, %s20
      %p26 = scmp.ge.s32.totalorder %s25, 1
      %s27 = scalar_select %p26, 0, %s25
      %s28 = sadd.s32 1, %s19
      %s29 = scalar_select %p26, %s28, %s19
      %p30 = scmp.ge.s32.totalorder %s29, 2
      %s31 = scalar_select %p30, 0, %s29
      %s32 = sadd.s32 %s19, %s20
      %s33 = sadd.s32 %s31, %s27
      %s34 = ssub.s32 %s32, %s33
      %p35 = scmp.eq.s32.totalorder %s34, 0
      %s37 = sadd.s32 %s36, 1
      %s38 = scalar_select %p35, %s36, %s37
      %p41 = pneg %p35
      %p42 = scmp.eq.s32.totalorder %s12, 1
      %p43 = por %p41, %p42
      %p44 = scmp.ne.s32.totalorder %s36, %s39
      %p45 = scmp.eq.s32.totalorder %s12, 0
      %p46 = por %p44, %p45
      %p47 = scmp.ne.s32.totalorder %s36, %s39
      %p48 = scmp.eq.s32.totalorder %s17, 1
      %p49 = por %p47, %p48
      %p50 = scmp.ne.s32.totalorder %s39, %s40
      %p51 = scmp.eq.s32.totalorder %s17, 0
      %p52 = por %p50, %p51
      %p53 = scmp.ne.s32.totalorder %s39, %s40
      %p54 = scmp.eq.s32.totalorder %s18, 1
      %p55 = por %p53, %p54
      %p57 = scmp.ne.s32.totalorder %s40, %s56
      %p58 = scmp.eq.s32.totalorder %s18, 0
      %p59 = por %p57, %p58
      %s61 = sadd.s32 %s60, 1
      %p64 = scmp.eq.s32.totalorder %s12, 1
      %p65 = scmp.ne.s32.totalorder %s60, %s62
      %p66 = scmp.eq.s32.totalorder %s12, 0
      %p67 = por %p65, %p66
      %p68 = scmp.ne.s32.totalorder %s60, %s62
      %p69 = scmp.eq.s32.totalorder %s17, 1
      %p70 = por %p68, %p69
      %p71 = scmp.ne.s32.totalorder %s62, %s63
      %p72 = scmp.eq.s32.totalorder %s17, 0
      %p73 = por %p71, %p72
      %p74 = scmp.ne.s32.totalorder %s62, %s63
      %p75 = scmp.eq.s32.totalorder %s18, 1
      %p76 = por %p74, %p75
      %p78 = scmp.ne.s32.totalorder %s63, %s77
      %p79 = scmp.eq.s32.totalorder %s18, 0
      %p80 = por %p78, %p79
      %s82 = sadd.s32 %s81, 1
      %p85 = scmp.eq.s32.totalorder %s12, 1
      %p86 = scmp.ne.s32.totalorder %s81, %s83
      %p87 = scmp.eq.s32.totalorder %s12, 0
      %p88 = por %p86, %p87
      %p89 = scmp.ne.s32.totalorder %s81, %s83
      %p90 = scmp.eq.s32.totalorder %s17, 1
      %p91 = por %p89, %p90
      %p92 = scmp.ne.s32.totalorder %s83, %s84
      %p93 = scmp.eq.s32.totalorder %s17, 0
      %p94 = por %p92, %p93
      %p95 = scmp.ne.s32.totalorder %s83, %s84
      %p96 = scmp.eq.s32.totalorder %s18, 1
      %p97 = por %p95, %p96
      %p99 = scmp.ne.s32.totalorder %s84, %s98
      %p100 = scmp.eq.s32.totalorder %s18, 0
      %p101 = por %p99, %p100
      %s102 = ssub.s32 %s19, %s31
      %s103 = ssub.s32 %s20, %s27
      %s104 = sor.u32 %s102, %s103
      %p105 = scmp.eq.s32.totalorder %s104, 0
      %s107 = sadd.s32 %s106, 1
      %s108 = scalar_select %p105, %s106, %s107
      %p111 = pneg %p105
      %p112 = scmp.eq.s32.totalorder %s12, 1
      %p113 = por %p111, %p112
      %p114 = scmp.ne.s32.totalorder %s106, %s109
      %p115 = scmp.eq.s32.totalorder %s12, 0
      %p116 = por %p114, %p115
      %p117 = scmp.ne.s32.totalorder %s106, %s109
      %p118 = scmp.eq.s32.totalorder %s17, 1
      %p119 = por %p117, %p118
      %p120 = scmp.ne.s32.totalorder %s109, %s110
      %p121 = scmp.eq.s32.totalorder %s17, 0
      %p122 = por %p120, %p121
      %p123 = scmp.ne.s32.totalorder %s109, %s110
      %p124 = scmp.eq.s32.totalorder %s18, 1
      %p125 = por %p123, %p124
      %p127 = scmp.ne.s32.totalorder %s110, %s126
      %p128 = scmp.eq.s32.totalorder %s18, 0
      %p129 = por %p127, %p128
      %p130 = scmp.le.s32.totalorder 1, %s12
      %p131 = scmp.lt.s32.totalorder %s12, 3
      %p132 = pnand %p130, %p131
      %p133 = pneg %p132
      // Predicated region
      $region9: #{batch_norm_conv1d.3} parent=5 // pred_check
        _
      $region10: #{batch_norm_conv1d.3} parent=5 // pred_check_branch
        %135 = sbr.rel (%p132) target = $region12
      $region11: #{batch_norm_conv1d.3} parent=5 // pred_region
        %s136 = ssub.s32 %s12, 1
        // Predicated region
        $region13: #{batch_norm_conv1d.3} parent=11 // pred_check
          %p137 = pneg %p73
        $region14: #{batch_norm_conv1d.3} parent=11 // pred_check_branch
          %139 = sbr.rel (%p137) target = $region16
        $region15: #{batch_norm_conv1d.3} parent=11 // pred_region
          _
        $region16: #{batch_norm_conv1d.3} parent=11 // pred_fallthru
          _
        // Predicated region
        $region17: #{batch_norm_conv1d.3} parent=11 // pred_check
          %p140 = pneg %p94
        $region18: #{batch_norm_conv1d.3} parent=11 // pred_check_branch
          %142 = sbr.rel (%p140) target = $region20
        $region19: #{batch_norm_conv1d.3} parent=11 // pred_region
          _
        $region20: #{batch_norm_conv1d.3} parent=11 // pred_fallthru
          _
      $region12: #{batch_norm_conv1d.3} parent=5 // pred_fallthru
        _
      %p143 = scmp.lt.s32.totalorder %s12, 2
      // Predicated region
      $region21: #{batch_norm_conv1d.3} parent=5 // pred_check
        %p144 = pneg %p143
      $region22: #{batch_norm_conv1d.3} parent=5 // pred_check_branch
        %146 = sbr.rel (%p144) target = $region24
      $region23: #{batch_norm_conv1d.3} parent=5 // pred_region
        // Predicated region
        $region25: #{batch_norm_conv1d.3} parent=23 // pred_check
          %p147 = pneg %p46
        $region26: #{batch_norm_conv1d.3} parent=23 // pred_check_branch
          %149 = sbr.rel (%p147) target = $region28
        $region27: #{batch_norm_conv1d.3} parent=23 // pred_region
          %s150 = sadd.s32 %s19, %s20
          %p151 = scmp.lt.s32.totalorder %s150, 1
          %s152 = scalar_select %p151, %s150, 1
          %s153 = smul.addr %s152, 4
          %s154 = scalar_lea.vmem %s0, %s153
          %s155 = sadd.s32 %s19, %s20
        $region28: #{batch_norm_conv1d.3} parent=23 // pred_fallthru
          _
      $region24: #{batch_norm_conv1d.3} parent=5 // pred_fallthru
        _
      %p156 = scmp.le.s32.totalorder 1, %s12
      %p157 = scmp.lt.s32.totalorder %s12, 3
      %p158 = pnand %p156, %p157
      %p159 = pneg %p158
      // Predicated region
      $region29: #{batch_norm_conv1d.3} parent=5 // pred_check
        _
      $region30: #{batch_norm_conv1d.3} parent=5 // pred_check_branch
        %161 = sbr.rel (%p158) target = $region32
      $region31: #{batch_norm_conv1d.3} parent=5 // pred_region
        %s162 = ssub.s32 %s12, 1
        %s163 = sadd.s32 %s21, %s22
        %p164 = scmp.lt.s32.totalorder %s163, 1
        %s165 = scalar_select %p164, %s163, 1
        %s166 = smul.addr %s165, 4
        %s167 = scalar_lea.vmem %s0, %s166
        %p168 = pneg %p52
        %p169 = pneg %p49
        %p170 = pneg %p73
        %p171 = pneg %p70
        %p172 = pneg %p94
        %p173 = pneg %p91
        %p174 = pneg %p122
        %p175 = pneg %p119
        %s176 = sand.u32 %s109, 1
        %s177 = scalar_lea.sflag [#allocation3], %s176
        %s178 = sand.u32 %s109, 1
        %s179 = smul.addr %s178, 8
        %s180 = scalar_lea.vmem [#allocation2], %s179
        %s181 = sadd.s32 %s21, %s22
        %p182 = scmp.lt.s32.totalorder %s181, 1
        %s183 = scalar_select %p182, %s181, 1
        %s184 = smul.addr %s183, 4
        %s185 = scalar_lea.vmem %s0, %s184
        %s186 = sadd.s32 %s21, %s22
        %v187 = vld [vmem:[%s185] sm:$0xf]
        %v188 = vunpack.c.l.bf16 %v187
        %v189 = vld [vmem:[%s1] sm:$0xff]
        %191 = vset.pattern.permute.xlu0 0
        %192 = vperm.xlu0 %191, %v189
        %v193 = vpop.permute.xlu0 %192
        %v195 = vmul.f32 %v188, %v193
        %v196 = vld [vmem:[%s2] sm:$0xff]
        %198 = vset.pattern.permute.xlu0 0
        %199 = vperm.xlu0 %198, %v196
        %v200 = vpop.permute.xlu0 %199
        %v202 = vadd.f32 %v195, %v200
        %v203 = vmax.f32 %v202, 0.0
        %204 = vst [vmem:[%s180] sm:$0xff] %v203
        %s205 = sand.u32 %s109, 1
        %s206 = scalar_lea.sflag [#allocation3], %s205
        %s207 = sand.u32 %s109, 1
        %s208 = smul.addr %s207, 8
        %s209 = scalar_lea.vmem [#allocation2], %s208
        // Predicated region
        $region33: #{batch_norm_conv1d.3} parent=31 // pred_check
          %p210 = pneg %p119
        $region34: #{batch_norm_conv1d.3} parent=31 // pred_check_branch
          %212 = sbr.rel (%p210) target = $region36
        $region35: #{batch_norm_conv1d.3} parent=31 // pred_region
          %s214 = ssub.s32 128, 128
          %215 = vsyncadd %s206, %s214
          %s216 = sadd.s32 %s22, %s21
          %s217 = smul.addr %s216, 128
          %s218 = scalar_lea.hbm %s3, %s217
          %s220 = sshll.u32 %s209, 4
          %s221 = int_to_ptr.vmem [resolvable:$true] %s220
          %223 = dma.vmem_to_hbm [thread:$0]  %s221, 128, %s218, %s206
        $region36: #{batch_norm_conv1d.3} parent=31 // pred_fallthru
          _
      $region32: #{batch_norm_conv1d.3} parent=5 // pred_fallthru
        _
      %p224 = scmp.le.s32.totalorder 2, %s12
      // Predicated region
      $region37: #{batch_norm_conv1d.3} parent=5 // pred_check
        %p225 = pneg %p224
      $region38: #{batch_norm_conv1d.3} parent=5 // pred_check_branch
        %227 = sbr.rel (%p225) target = $region40
      $region39: #{batch_norm_conv1d.3} parent=5 // pred_region
        %s228 = ssub.s32 %s12, 2
        // Predicated region
        $region41: #{batch_norm_conv1d.3} parent=39 // pred_check
          %p229 = pneg %p125
        $region42: #{batch_norm_conv1d.3} parent=39 // pred_check_branch
          %231 = sbr.rel (%p229) target = $region44
        $region43: #{batch_norm_conv1d.3} parent=39 // pred_region
          %s232 = sand.u32 %s110, 1
          %s233 = scalar_lea.sflag [#allocation3], %s232
          %s234 = sand.u32 %s110, 1
          %s235 = smul.addr %s234, 8
          %s236 = scalar_lea.vmem [#allocation2], %s235
          %237 = dma.done %s233, 128
        $region44: #{batch_norm_conv1d.3} parent=39 // pred_fallthru
          _
      $region40: #{batch_norm_conv1d.3} parent=5 // pred_fallthru
        _
    $region6: #{batch_norm_conv1d.3} parent=1 // loop_footer
      %s16 = sadd.s32 1, %s12
    $region7: #{batch_norm_conv1d.3} parent=1 // loop_footer_branch
      %11 = sbr.rel target = $region3
    $region8: #{batch_norm_conv1d.3} parent=1 // loop_exit
      _
    %238 = vsyncpa [#allocation3], 1
    %s239 = scalar_lea.sflag [#allocation3], 1
    %240 = vsyncpa %s239, 1

// kernel: batch_norm_conv1d.2
$region0: #{batch_norm_conv1d.2}
  #allocation0 [shape = 'u32[]', space=smem, size = 0x4, offset = 0x4, fixed_abs, tag = 'smem constant byte address 0x4 - core index']
  #allocation1 [shape = 'u32[144,128]{1,0:T(1,128)}', space=vmem, size = 0x12000, scoped, tag = 'internal scratch']
  %s0 = inlined_call_operand.vmem [shape: bf16[16,256], index: 0, kind: input, shape index: {}]
  %s1 = inlined_call_operand.vmem [shape: bf16[8,16], index: 1, kind: input, shape index: {}]
  %s2 = inlined_call_operand.vmem [shape: bf16[8,256], index: 2, kind: output, shape index: {0}]
  %s3 = inlined_call_operand.vmem [shape: f32[2,8,2], index: 3, kind: output, shape index: {1}]
  %4 = xla_tuple %s2, %s3
  %s5 = sld [smem:[#allocation0]]
  $region90: #{batch_norm_conv1d.2} parent=0
    _
  %s7 = ssub.s32 1, %s5
  %s8 = scalar_select 0, %s7, %s5
  $region1: #{batch_norm_conv1d.2} parent=0
    #allocation2 [shape = 'u8[8192]{0}', space=vmem, size = 0x2000, scoped, tag = 'input window, operand 0']
    loop: start=0, step=1, limit=4
    $region2: #{batch_norm_conv1d.2} parent=1 // loop_pre_header
      _
    $region3: #{batch_norm_conv1d.2} parent=1 // loop_header
      %s10 = sphi 0, %s14
      %p11 = scmp.ge.s32.totalorder %s10, 4
      %s20 = sphi 0, %s22
      %s23 = sphi 0, %s20
      %s24 = sphi 0, %s23
      %s40 = sphi 0, %s24
      %s44 = sphi 0, %s44
      %s46 = sphi 0, %s44
      %s47 = sphi 0, %s46
      %s61 = sphi 0, %s47
      %s67 = sphi 0, %s69
      %s70 = sphi 0, %s67
      %s71 = sphi 0, %s70
      %s87 = sphi 0, %s71
      %s93 = sphi 0, %s95
      %s96 = sphi 0, %s93
      %s97 = sphi 0, %s96
      %s113 = sphi 0, %s97
    $region4: #{batch_norm_conv1d.2} parent=1 // loop_header_branch
      %13 = sbr.rel (%p11) target = $region8
    $region5: #{batch_norm_conv1d.2} parent=1 // loop_body
      %s15 = ssub.s32 %s10, 1
      %s16 = ssub.s32 %s10, 2
      %s17 = sadd.s32 %s10, 1
      %s18 = ssub.s32 %s10, %s17
      %p19 = scmp.eq.s32.totalorder %s18, 0
      %s21 = sadd.s32 %s20, 1
      %s22 = scalar_select %p19, %s20, %s21
      %p25 = pneg %p19
      %p26 = scmp.eq.s32.totalorder %s10, 1
      %p27 = por %p25, %p26
      %p28 = scmp.ne.s32.totalorder %s20, %s23
      %p29 = scmp.eq.s32.totalorder %s10, 0
      %p30 = por %p28, %p29
      %p31 = scmp.ne.s32.totalorder %s20, %s23
      %p32 = scmp.eq.s32.totalorder %s15, 1
      %p33 = por %p31, %p32
      %p34 = scmp.ne.s32.totalorder %s23, %s24
      %p35 = scmp.eq.s32.totalorder %s15, 0
      %p36 = por %p34, %p35
      %p37 = scmp.ne.s32.totalorder %s23, %s24
      %p38 = scmp.eq.s32.totalorder %s16, 1
      %p39 = por %p37, %p38
      %p41 = scmp.ne.s32.totalorder %s24, %s40
      %p42 = scmp.eq.s32.totalorder %s16, 0
      %p43 = por %p41, %p42
      %s45 = sadd.s32 %s44, 1
      %p48 = scmp.eq.s32.totalorder %s10, 1
      %p49 = scmp.ne.s32.totalorder %s44, %s46
      %p50 = scmp.eq.s32.totalorder %s10, 0
      %p51 = por %p49, %p50
      %p52 = scmp.ne.s32.totalorder %s44, %s46
      %p53 = scmp.eq.s32.totalorder %s15, 1
      %p54 = por %p52, %p53
      %p55 = scmp.ne.s32.totalorder %s46, %s47
      %p56 = scmp.eq.s32.totalorder %s15, 0
      %p57 = por %p55, %p56
      %p58 = scmp.ne.s32.totalorder %s46, %s47
      %p59 = scmp.eq.s32.totalorder %s16, 1
      %p60 = por %p58, %p59
      %p62 = scmp.ne.s32.totalorder %s47, %s61
      %p63 = scmp.eq.s32.totalorder %s16, 0
      %p64 = por %p62, %p63
      %s65 = ssub.s32 %s10, %s17
      %p66 = scmp.eq.s32.totalorder %s65, 0
      %s68 = sadd.s32 %s67, 1
      %s69 = scalar_select %p66, %s67, %s68
      %p72 = pneg %p66
      %p73 = scmp.eq.s32.totalorder %s10, 1
      %p74 = por %p72, %p73
      %p75 = scmp.ne.s32.totalorder %s67, %s70
      %p76 = scmp.eq.s32.totalorder %s10, 0
      %p77 = por %p75, %p76
      %p78 = scmp.ne.s32.totalorder %s67, %s70
      %p79 = scmp.eq.s32.totalorder %s15, 1
      %p80 = por %p78, %p79
      %p81 = scmp.ne.s32.totalorder %s70, %s71
      %p82 = scmp.eq.s32.totalorder %s15, 0
      %p83 = por %p81, %p82
      %p84 = scmp.ne.s32.totalorder %s70, %s71
      %p85 = scmp.eq.s32.totalorder %s16, 1
      %p86 = por %p84, %p85
      %p88 = scmp.ne.s32.totalorder %s71, %s87
      %p89 = scmp.eq.s32.totalorder %s16, 0
      %p90 = por %p88, %p89
      %s91 = ssub.s32 %s10, %s17
      %p92 = scmp.eq.s32.totalorder %s91, 0
      %s94 = sadd.s32 %s93, 1
      %s95 = scalar_select %p92, %s93, %s94
      %p98 = pneg %p92
      %p99 = scmp.eq.s32.totalorder %s10, 1
      %p100 = por %p98, %p99
      %p101 = scmp.ne.s32.totalorder %s93, %s96
      %p102 = scmp.eq.s32.totalorder %s10, 0
      %p103 = por %p101, %p102
      %p104 = scmp.ne.s32.totalorder %s93, %s96
      %p105 = scmp.eq.s32.totalorder %s15, 1
      %p106 = por %p104, %p105
      %p107 = scmp.ne.s32.totalorder %s96, %s97
      %p108 = scmp.eq.s32.totalorder %s15, 0
      %p109 = por %p107, %p108
      %p110 = scmp.ne.s32.totalorder %s96, %s97
      %p111 = scmp.eq.s32.totalorder %s16, 1
      %p112 = por %p110, %p111
      %p114 = scmp.ne.s32.totalorder %s97, %s113
      %p115 = scmp.eq.s32.totalorder %s16, 0
      %p116 = por %p114, %p115
      %p117 = scmp.le.s32.totalorder 1, %s10
      %p118 = scmp.lt.s32.totalorder %s10, 3
      %p119 = pnand %p117, %p118
      %p120 = pneg %p119
      // Predicated region
      $region9: #{batch_norm_conv1d.2} parent=5 // pred_check
        _
      $region10: #{batch_norm_conv1d.2} parent=5 // pred_check_branch
        %122 = sbr.rel (%p119) target = $region12
      $region11: #{batch_norm_conv1d.2} parent=5 // pred_region
        %s123 = ssub.s32 %s10, 1
        // Predicated region
        $region13: #{batch_norm_conv1d.2} parent=11 // pred_check
          %p124 = pneg %p57
        $region14: #{batch_norm_conv1d.2} parent=11 // pred_check_branch
          %126 = sbr.rel (%p124) target = $region16
        $region15: #{batch_norm_conv1d.2} parent=11 // pred_region
          _
        $region16: #{batch_norm_conv1d.2} parent=11 // pred_fallthru
          _
      $region12: #{batch_norm_conv1d.2} parent=5 // pred_fallthru
        _
      %p127 = scmp.lt.s32.totalorder %s10, 2
      // Predicated region
      $region17: #{batch_norm_conv1d.2} parent=5 // pred_check
        %p128 = pneg %p127
      $region18: #{batch_norm_conv1d.2} parent=5 // pred_check_branch
        %130 = sbr.rel (%p128) target = $region20
      $region19: #{batch_norm_conv1d.2} parent=5 // pred_region
        // Predicated region
        $region21: #{batch_norm_conv1d.2} parent=19 // pred_check
          %p131 = pneg %p30
        $region22: #{batch_norm_conv1d.2} parent=19 // pred_check_branch
          %133 = sbr.rel (%p131) target = $region24
        $region23: #{batch_norm_conv1d.2} parent=19 // pred_region
          %s134 = sand.u32 %s20, 1
          %s135 = sand.u32 %s20, 1
          %s136 = smul.addr %s135, 8
          %s137 = scalar_lea.vmem [#allocation2], %s136
          %s138 = smul.addr %s10, 4
          %s139 = scalar_lea.vmem %s0, %s138
          // Predicated region
          $region25: #{batch_norm_conv1d.2} parent=23 // pred_check
            _
          $region26: #{batch_norm_conv1d.2} parent=23 // pred_check_branch
            %141 = sbr.rel (0) target = $region28
          $region27: #{batch_norm_conv1d.2} parent=23 // pred_region
            // Predicated region
            $region29: #{batch_norm_conv1d.2} parent=27 // pred_check
              _
            $region30: #{batch_norm_conv1d.2} parent=27 // pred_check_branch
              %143 = sbr.rel target = $region32
            $region31: #{batch_norm_conv1d.2} parent=27 // pred_region
              // Predicated region
              $region44: #{batch_norm_conv1d.2} parent=31 // pred_check
                _
              $region45: #{batch_norm_conv1d.2} parent=31 // pred_check_branch
                %161 = sbr.rel (0) target = $region47
              $region46: #{batch_norm_conv1d.2} parent=31 // pred_region
                loop: start=0, step=1, limit=1
                $region48: #{batch_norm_conv1d.2} parent=46 // loop_pre_header
                  _
                $region49: #{batch_norm_conv1d.2} parent=46 // loop_header
                  %s163 = sphi 0, %s167
                  %p164 = scmp.ge.s32.totalorder %s163, 1
                  %s168 = sphi %s139, %s139
                  %s169 = sphi %s137, %s137
                $region50: #{batch_norm_conv1d.2} parent=46 // loop_header_branch
                  %166 = sbr.rel (%p164) target = $region54
                $region51: #{batch_norm_conv1d.2} parent=46 // loop_body
                  _
                $region52: #{batch_norm_conv1d.2} parent=46 // loop_footer
                  %s167 = sadd.s32 1, %s163
                $region53: #{batch_norm_conv1d.2} parent=46 // loop_footer_branch
                  %162 = sbr.rel target = $region49
                $region54: #{batch_norm_conv1d.2} parent=46 // loop_exit
                  _
                %s171 = ssub.s32 16, 1
                loop: start=0, step=1, limit=1
                $region55: #{batch_norm_conv1d.2} parent=46 // loop_pre_header
                  _
                $region56: #{batch_norm_conv1d.2} parent=46 // loop_header
                  %s173 = sphi 0, %s177
                  %p174 = scmp.ge.s32.totalorder %s173, 1
                  %s178 = sphi %s139, %s139
                  %s179 = sphi %s137, %s137
                $region57: #{batch_norm_conv1d.2} parent=46 // loop_header_branch
                  %176 = sbr.rel (%p174) target = $region61
                $region58: #{batch_norm_conv1d.2} parent=46 // loop_body
                  %v180 = vld [vmem:[%s178] sm:%s171]
                  %181 = vst [vmem:[%s179] sm:%s171] %v180
                  %v182 = vld [vmem:[%s178 + $0x8] sm:%s171]
                  %183 = vst [vmem:[%s179 + $0x4] sm:%s171] %v182
                $region59: #{batch_norm_conv1d.2} parent=46 // loop_footer
                  %s177 = sadd.s32 1, %s173
                $region60: #{batch_norm_conv1d.2} parent=46 // loop_footer_branch
                  %172 = sbr.rel target = $region56
                $region61: #{batch_norm_conv1d.2} parent=46 // loop_exit
                  _
              $region47: #{batch_norm_conv1d.2} parent=31 // pred_fallthru
                _
            $region32: #{batch_norm_conv1d.2} parent=27 // pred_fallthru
              _
            // Predicated region
            $region33: #{batch_norm_conv1d.2} parent=27 // pred_check
              _
            $region34: #{batch_norm_conv1d.2} parent=27 // pred_check_branch
              %145 = sbr.rel (0) target = $region36
            $region35: #{batch_norm_conv1d.2} parent=27 // pred_region
              %s147 = ssub.s32 16, 1
              loop: start=0, step=1, limit=1
              $region37: #{batch_norm_conv1d.2} parent=35 // loop_pre_header
                _
              $region38: #{batch_norm_conv1d.2} parent=35 // loop_header
                %s149 = sphi 0, %s153
                %p150 = scmp.ge.s32.totalorder %s149, 1
                %s154 = sphi %s139, %s139
                %s155 = sphi %s137, %s137
              $region39: #{batch_norm_conv1d.2} parent=35 // loop_header_branch
                %152 = sbr.rel (%p150) target = $region43
              $region40: #{batch_norm_conv1d.2} parent=35 // loop_body
                %v156 = vld [vmem:[%s154] sm:%s147]
                %157 = vst [vmem:[%s155] sm:%s147] %v156
                %v158 = vld [vmem:[%s154 + $0x8] sm:%s147]
                %159 = vst [vmem:[%s155 + $0x4] sm:%s147] %v158
              $region41: #{batch_norm_conv1d.2} parent=35 // loop_footer
                %s153 = sadd.s32 1, %s149
              $region42: #{batch_norm_conv1d.2} parent=35 // loop_footer_branch
                %148 = sbr.rel target = $region38
              $region43: #{batch_norm_conv1d.2} parent=35 // loop_exit
                _
            $region36: #{batch_norm_conv1d.2} parent=27 // pred_fallthru
              _
          $region28: #{batch_norm_conv1d.2} parent=23 // pred_fallthru
            _
          %184 = vnop
        $region24: #{batch_norm_conv1d.2} parent=19 // pred_fallthru
          _
      $region20: #{batch_norm_conv1d.2} parent=5 // pred_fallthru
        _
      %p185 = scmp.le.s32.totalorder 1, %s10
      %p186 = scmp.lt.s32.totalorder %s10, 3
      %p187 = pnand %p185, %p186
      %p188 = pneg %p187
      // Predicated region
      $region62: #{batch_norm_conv1d.2} parent=5 // pred_check
        _
      $region63: #{batch_norm_conv1d.2} parent=5 // pred_check_branch
        %190 = sbr.rel (%p187) target = $region65
      $region64: #{batch_norm_conv1d.2} parent=5 // pred_region
        %s191 = ssub.s32 %s10, 1
        %s192 = sand.u32 %s23, 1
        %s193 = sand.u32 %s23, 1
        %s194 = smul.addr %s193, 8
        %s195 = scalar_lea.vmem [#allocation2], %s194
        // Predicated region
        $region66: #{batch_norm_conv1d.2} parent=64 // pred_check
          %p196 = pneg %p36
        $region67: #{batch_norm_conv1d.2} parent=64 // pred_check_branch
          %198 = sbr.rel (%p196) target = $region69
        $region68: #{batch_norm_conv1d.2} parent=64 // pred_region
          _
        $region69: #{batch_norm_conv1d.2} parent=64 // pred_fallthru
          _
        %s199 = sand.u32 %s23, 1
        %s200 = sand.u32 %s23, 1
        %s201 = smul.addr %s200, 8
        %s202 = scalar_lea.vmem [#allocation2], %s201
        %p203 = pneg %p36
        %p204 = pneg %p33
        %p205 = pneg %p57
        %p206 = pneg %p54
        %p207 = pneg %p83
        %p208 = pneg %p80
        %p209 = scmp.lt.s32.totalorder %s15, 1
        %s210 = scalar_select %p209, %s15, 1
        %s211 = smul.addr %s210, 4
        %s212 = scalar_lea.vmem %s2, %s211
        %p213 = pneg %p109
        %p214 = pneg %p106
        %p215 = scmp.lt.s32.totalorder %s15, 1
        %s216 = scalar_select %p215, %s15, 1
        %s217 = smul.addr %s216, 8
        %s218 = scalar_lea.vmem %s3, %s217
        %p219 = scmp.lt.s32.totalorder %s15, 1
        %s220 = scalar_select %p219, %s15, 1
        %s221 = smul.addr %s220, 4
        %s222 = scalar_lea.vmem %s2, %s221
        %p223 = scmp.lt.s32.totalorder %s15, 1
        %s224 = scalar_select %p223, %s15, 1
        %s225 = smul.addr %s224, 8
        %s226 = scalar_lea.vmem %s3, %s225
        %v228 = vld [vmem:[%s1] sm:$0xf]
        %v229 = vld [vmem:[%s195] sm:$0xf]
        %v230 = vld [vmem:[%s195 + $0x4] sm:$0xf]
        %v233 = vunpack.c.l.b16 %v229
        %v234 = vunpack.c.l.b16 %v230
        %v235 = vpack.c.b16 %v234, %v233
        %vm237 = vcmask 130048
        %v239 = vsel %vm237, %v228, 0
        %241 = vmatprep.subr.bf16.mxu0 0
        %242 = vmatpush1.bf16.msra.mxu0 0
        %243 = vmatprep.subr.bf16.mxu0 0
        %244 = vmatpush1.bf16.msra.mxu0 0
        %245 = vmatprep.subr.bf16.mxu0 0
        %246 = vmatpush1.bf16.msra.mxu0 0
        %247 = vmatprep.subr.bf16.mxu0 0
        %248 = vmatpush1.bf16.msra.mxu0 0
        %249 = vmatprep.subr.bf16.mxu0 0
        %250 = vmatpush1.bf16.msra.mxu0 0
        %251 = vmatprep.subr.bf16.mxu0 0
        %252 = vmatpush1.bf16.msra.mxu0 0
        %253 = vmatprep.subr.bf16.mxu0 0
        %254 = vmatpush1.bf16.msra.mxu0 0
        %255 = vmatprep.subr.bf16.mxu0 0
        %256 = vmatpush1.bf16.msra.mxu0 %v235
        %257 = vmatprep.subr.bf16.mxu0 0
        %258 = vmatpush2.bf16.msra.mxu0 0
        %259 = vmatprep.subr.bf16.mxu0 0
        %260 = vmatpush2.bf16.msra.mxu0 0
        %261 = vmatprep.subr.bf16.mxu0 0
        %262 = vmatpush2.bf16.msra.mxu0 0
        %263 = vmatprep.subr.bf16.mxu0 0
        %264 = vmatpush2.bf16.msra.mxu0 0
        %265 = vmatprep.subr.bf16.mxu0 0
        %266 = vmatpush2.bf16.msra.mxu0 0
        %267 = vmatprep.subr.bf16.mxu0 0
        %268 = vmatpush2.bf16.msra.mxu0 0
        %269 = vmatprep.subr.bf16.mxu0 0
        %270 = vmatpush2.bf16.msra.mxu0 0
        %271 = vmatprep.subr.bf16.mxu0 0
        %272 = vmatpush2.bf16.msra.mxu0 0
        %273 = vmatprep.mubr.bf16.mxu0 0
        %274 = vmatmul.mubr.bf16.gmra.mxu0 %v239
        %v275 = vpop.f32.mrf.mxu0
        %v276 = vadd.f32 0.0, %v275
        %v277 = vpop.f32.mrf.mxu0
        %v278 = vpop.f32.mrf.mxu0
        %v279 = vpop.f32.mrf.mxu0
        %280 = vdwg.mxu0
        %v281 = vpack.c.bf16 %v276, %v276
        %282 = vst [vmem:[%s222] sm:$0xf] %v281
        %283 = vadd.xlane.f32.xlu0 %v276
        %v284 = vpop.xlane.xlu0 %283
        %v285 = vmul.f32 %v284, 0.0078125
        %v286 = vsub.f32 %v276, %v285
        %v287 = vmul.f32 %v286, %v286
        %288 = vadd.xlane.f32.xlu0 %v287
        %v289 = vpop.xlane.xlu0 %288
        %v290 = vlaneseq
        %v291 = vand.u32 %v290, 127
        %vm292 = vcmp.eq.s32.totalorder %v291, 0
        %v293 = vsel %vm292, %v284, %v289
        %vm294 = vcmask 15360
        %295 = vst.msk [vmem:[%s226] sm:$0xff] %vm294, %v293
        %p296 = scmp.lt.s32.totalorder %s15, 1
        %s297 = scalar_select %p296, %s15, 1
        %s298 = smul.addr %s297, 4
        %s299 = scalar_lea.vmem %s2, %s298
        %p300 = scmp.lt.s32.totalorder %s15, 1
        %s301 = scalar_select %p300, %s15, 1
        %s302 = smul.addr %s301, 8
        %s303 = scalar_lea.vmem %s3, %s302
        // Predicated region
        $region70: #{batch_norm_conv1d.2} parent=64 // pred_check
          %p304 = pneg %p80
        $region71: #{batch_norm_conv1d.2} parent=64 // pred_check_branch
          %306 = sbr.rel (%p304) target = $region73
        $region72: #{batch_norm_conv1d.2} parent=64 // pred_region
          _
        $region73: #{batch_norm_conv1d.2} parent=64 // pred_fallthru
          _
        // Predicated region
        $region74: #{batch_norm_conv1d.2} parent=64 // pred_check
          %p307 = pneg %p106
        $region75: #{batch_norm_conv1d.2} parent=64 // pred_check_branch
          %309 = sbr.rel (%p307) target = $region77
        $region76: #{batch_norm_conv1d.2} parent=64 // pred_region
          _
        $region77: #{batch_norm_conv1d.2} parent=64 // pred_fallthru
          _
      $region65: #{batch_norm_conv1d.2} parent=5 // pred_fallthru
        _
      %p310 = scmp.le.s32.totalorder 2, %s10
      // Predicated region
      $region78: #{batch_norm_conv1d.2} parent=5 // pred_check
        %p311 = pneg %p310
      $region79: #{batch_norm_conv1d.2} parent=5 // pred_check_branch
        %313 = sbr.rel (%p311) target = $region81
      $region80: #{batch_norm_conv1d.2} parent=5 // pred_region
        %s314 = ssub.s32 %s10, 2
        // Predicated region
        $region82: #{batch_norm_conv1d.2} parent=80 // pred_check
          %p315 = pneg %p86
        $region83: #{batch_norm_conv1d.2} parent=80 // pred_check_branch
          %317 = sbr.rel (%p315) target = $region85
        $region84: #{batch_norm_conv1d.2} parent=80 // pred_region
          %p318 = scmp.lt.s32.totalorder %s16, 1
          %s319 = scalar_select %p318, %s16, 1
          %s320 = smul.addr %s319, 4
          %s321 = scalar_lea.vmem %s2, %s320
        $region85: #{batch_norm_conv1d.2} parent=80 // pred_fallthru
          _
        // Predicated region
        $region86: #{batch_norm_conv1d.2} parent=80 // pred_check
          %p322 = pneg %p112
        $region87: #{batch_norm_conv1d.2} parent=80 // pred_check_branch
          %324 = sbr.rel (%p322) target = $region89
        $region88: #{batch_norm_conv1d.2} parent=80 // pred_region
          %p325 = scmp.lt.s32.totalorder %s16, 1
          %s326 = scalar_select %p325, %s16, 1
          %s327 = smul.addr %s326, 8
          %s328 = scalar_lea.vmem %s3, %s327
        $region89: #{batch_norm_conv1d.2} parent=80 // pred_fallthru
          _
      $region81: #{batch_norm_conv1d.2} parent=5 // pred_fallthru
        _
    $region6: #{batch_norm_conv1d.2} parent=1 // loop_footer
      %s14 = sadd.s32 1, %s10
    $region7: #{batch_norm_conv1d.2} parent=1 // loop_footer_branch
      %9 = sbr.rel target = $region3
    $region8: #{batch_norm_conv1d.2} parent=1 // loop_exit
      _

</llo_original>
